<compile_context>
chip_gen: v7x
topology: tpu7x:2x2x1
jax: 0.10.0
libtpu: 0.0.40
codegen_flags: <defaults>
</compile_context>

<pallas_src>
import jax
import jax.numpy as jnp
from jax.experimental import pallas as pl
from jax.experimental.pallas import tpu as pltpu


def _round_up(x: int, m: int) -> int:
    return (x + m - 1) // m * m


def _make_bnn_kernel(num_layers: int, f_pads: tuple):
    """Fused (Linear -> Sigmoid) x num_layers kernel body."""

    def kernel(*refs):
        x_ref = refs[0]
        w_refs = refs[1:1 + num_layers]
        out_ref = refs[1 + num_layers]
        scratch = (refs[2 + num_layers], refs[3 + num_layers])

        cur = x_ref[...]  # bf16 (TM, f_pads[0])
        for l in range(num_layers):
            # MXU matmul: bf16 inputs, f32 accumulation.
            z = jnp.dot(cur, w_refs[l][...],
                        preferred_element_type=jnp.float32)
            # Sigmoid = 1 / (1 + exp(-z)) in f32 on the EUP (exp + approx
            # reciprocal) -> essentially free next to the matmul.
            act = pl.reciprocal(1.0 + jnp.exp(-z), approx=True)
            if l == num_layers - 1:
                out_ref[...] = act.astype(out_ref.dtype)
            else:
                f_out = f_pads[l + 1]
                buf = scratch[l % 2]
                buf[:, :f_out] = act                       # f32 stays in VMEM
                cur = buf[:, :f_out].astype(jnp.bfloat16)  # bf16 matmul input

    return kernel


def bnn_forward(x, torch_weights, *, tm_max: int = 512):
    """BNN forward pass (Sigmoid / use_DNN branch).

    x:             (..., input_dim) float array.
    torch_weights: list of (out_features, in_features) arrays, i.e. the
                   PyTorch nn.Linear(bias=False) weight layout.
    Returns:       (..., output_dim) float32.
    """
    num_layers = len(torch_weights)
    dims = [torch_weights[0].shape[1]] + [w.shape[0] for w in torch_weights]
    assert x.shape[-1] == dims[0]

    lead_shape = x.shape[:-1]
    rows = 1
    for d in lead_shape:
        rows *= int(d)

    # Feature dims padded to lane multiples (128): unmasked, lane-dense tiles
    # (including the final output slab, even if output_dim is small e.g. 10).
    f_pads = [_round_up(d, 128) for d in dims]

    # Row tile: as large as possible (<= tm_max) to amortize per-grid-step
    # overhead; pad rows so every block is (8,128)-aligned and uniform.
    rows8 = _round_up(max(rows, 8), 8)
    tm = rows8 if rows8 <= tm_max else tm_max
    rows_pad = _round_up(rows8, tm)

    x2 = jnp.reshape(x, (rows, dims[0])).astype(jnp.bfloat16)
    x2 = jnp.pad(x2, ((0, rows_pad - rows), (0, f_pads[0] - dims[0])))

    ws = []
    for l, w in enumerate(torch_weights):
        w_t = jnp.asarray(w).T.astype(jnp.bfloat16)  # (d_in, d_out) for x @ W
        w_t = jnp.pad(w_t, ((0, f_pads[l] - dims[l]),
                            (0, f_pads[l + 1] - dims[l + 1])))
        ws.append(w_t)

    f_scratch = max(f_pads[1:]) if num_layers > 1 else f_pads[-1]

    in_specs = [pl.BlockSpec((tm, f_pads[0]), lambda i: (i, 0))]
    for l in range(num_layers):
        # Block index is constant across the grid -> weight stays VMEM-resident.
        in_specs.append(
            pl.BlockSpec((f_pads[l], f_pads[l + 1]), lambda i: (0, 0)))
    out_spec = pl.BlockSpec((tm, f_pads[-1]), lambda i: (i, 0))

    grid = (rows_pad // tm,)
    kernel = _make_bnn_kernel(num_layers, tuple(f_pads))

    out = pl.pallas_call(
        kernel,
        out_shape=jax.ShapeDtypeStruct((rows_pad, f_pads[-1]), jnp.float32),
        grid_spec=pltpu.PrefetchScalarGridSpec(
            num_scalar_prefetch=0,
            grid=grid,
            in_specs=in_specs,
            out_specs=out_spec,
            scratch_shapes=[pltpu.VMEM((tm, f_scratch), jnp.float32),
                            pltpu.VMEM((tm, f_scratch), jnp.float32)],
        ),
        compiler_params=pltpu.CompilerParams(
            # Row axis is independent -> megacore sharding on v7x (2 TCs).
            dimension_semantics=("parallel",),
            # Raise scoped VMEM above the 32 MiB default for big row tiles +
            # resident weights (still <= physical VMEM on v5e/v6e/v7x).
            vmem_limit_bytes=64 * 1024 * 1024,
        ),
    )(x2, *ws)

    out = out[:rows, :dims[-1]]
    return jnp.reshape(out, lead_shape + (dims[-1],))


if __name__ == "__main__":
    key = jax.random.PRNGKey(0)

    # Small shapes consistent with the module: (batch, time, features) input,
    # dims = [input_dim] + hidden_layers + [output_dim].
    batch, seq = 2, 8
    input_dim, hidden_layers, output_dim = 96, [128, 80], 10
    dims = [input_dim] + hidden_layers + [output_dim]

    keys = jax.random.split(key, len(dims))
    x = jax.random.normal(keys[0], (batch, seq, input_dim), dtype=jnp.float32)

    # PyTorch nn.Linear(d1, d2, bias=False) weights: shape (d2, d1),
    # initialized U(-1/sqrt(d1), 1/sqrt(d1)).
    weights = []
    for k, (d1, d2) in zip(keys[1:], zip(dims[:-1], dims[1:])):
        bound = 1.0 / (d1 ** 0.5)
        weights.append(jax.random.uniform(k, (d2, d1), jnp.float32,
                                          minval=-bound, maxval=bound))

    out = bnn_forward(x, weights)
    out = jax.block_until_ready(out)

    # Pure-JAX f32 reference of the same forward pass.
    ref = x
    for w in weights:
        ref = jax.nn.sigmoid(ref @ w.T)

    if out.shape != ref.shape or not jnp.allclose(out, ref, atol=3e-2, rtol=3e-2):
        raise AssertionError(
            "mismatch vs reference, max abs err = "
            f"{float(jnp.max(jnp.abs(out - ref)))}")

    print("KERNEL_OK")
</pallas_src>

<mosaic_0001>
module attributes {stable_mosaic.version = 11 : i64} {
  func.func @kernel(%arg0: i32, %arg1: memref<16x128xbf16, #tpu.memory_space<vmem>>, %arg2: memref<128x128xbf16, #tpu.memory_space<vmem>>, %arg3: memref<128x128xbf16, #tpu.memory_space<vmem>>, %arg4: memref<128x128xbf16, #tpu.memory_space<vmem>>, %arg5: memref<16x128xf32, #tpu.memory_space<vmem>>, %arg6: memref<16x128xf32, #tpu.memory_space<vmem>>, %arg7: memref<16x128xf32, #tpu.memory_space<vmem>>) attributes {dimension_semantics = [#tpu.dimension_semantics<parallel>], iteration_bounds = array<i64: 1>, scalar_prefetch = 0 : i64, scratch_operands = 2 : i64, tpu.core_type = #tpu.core_type<tc>, window_params = [{transform_indices = @transform_0, window_bounds = array<i64: 16, 128>}, {pipeline_mode = #tpu.pipeline_mode<synchronous>, transform_indices = @transform_1, window_bounds = array<i64: 128, 128>}, {pipeline_mode = #tpu.pipeline_mode<synchronous>, transform_indices = @transform_2, window_bounds = array<i64: 128, 128>}, {pipeline_mode = #tpu.pipeline_mode<synchronous>, transform_indices = @transform_3, window_bounds = array<i64: 128, 128>}, {transform_indices = @transform_4, window_bounds = array<i64: 16, 128>}]} {
    %c0 = arith.constant 0 : index
    %c0_0 = arith.constant 0 : index
    %0 = vector.load %arg1[%c0, %c0_0] : memref<16x128xbf16, #tpu.memory_space<vmem>>, vector<16x128xbf16>
    %c0_1 = arith.constant 0 : index
    %c0_2 = arith.constant 0 : index
    %1 = vector.load %arg2[%c0_1, %c0_2] : memref<128x128xbf16, #tpu.memory_space<vmem>>, vector<128x128xbf16>
    %cst = arith.constant dense<0.000000e+00> : vector<16x128xf32>
    %2 = tpu.matmul %0, %1, %cst {dimension_numbers = #tpu.dot_dimension_numbers<[1], [0], [0], [1], [0, 0, 1, 1], [], []>} : vector<16x128xbf16>, vector<128x128xbf16>, vector<16x128xf32> -> vector<16x128xf32>
    %cst_3 = arith.constant 0.000000e+00 : f32
    %3 = vector.broadcast %cst_3 : f32 to vector<16x128xf32>
    %4 = arith.subf %3, %2 : vector<16x128xf32>
    %5 = math.exp %4 : vector<16x128xf32>
    %cst_4 = arith.constant 1.000000e+00 : f32
    %6 = vector.broadcast %cst_4 : f32 to vector<16x128xf32>
    %7 = arith.addf %6, %5 : vector<16x128xf32>
    %8 = tpu.reciprocal %7 {approx = true} : vector<16x128xf32> -> vector<16x128xf32>
    %c0_5 = arith.constant 0 : index
    %c0_6 = arith.constant 0 : index
    %9 = vector.load %arg6[%c0_5, %c0_6] : memref<16x128xf32, #tpu.memory_space<vmem>>, vector<16x128xf32>
    tpu.vector_store %arg6[%c0_5, %c0_6], %8 {strides = array<i32>} : memref<16x128xf32, #tpu.memory_space<vmem>>, vector<16x128xf32>,
    %c0_7 = arith.constant 0 : index
    %c0_8 = arith.constant 0 : index
    %10 = vector.load %arg6[%c0_7, %c0_8] : memref<16x128xf32, #tpu.memory_space<vmem>>, vector<16x128xf32>
    %11 = arith.truncf %10 : vector<16x128xf32> to vector<16x128xbf16>
    %c0_9 = arith.constant 0 : index
    %c0_10 = arith.constant 0 : index
    %12 = vector.load %arg3[%c0_9, %c0_10] : memref<128x128xbf16, #tpu.memory_space<vmem>>, vector<128x128xbf16>
    %cst_11 = arith.constant dense<0.000000e+00> : vector<16x128xf32>
    %13 = tpu.matmul %11, %12, %cst_11 {dimension_numbers = #tpu.dot_dimension_numbers<[1], [0], [0], [1], [0, 0, 1, 1], [], []>} : vector<16x128xbf16>, vector<128x128xbf16>, vector<16x128xf32> -> vector<16x128xf32>
    %cst_12 = arith.constant 0.000000e+00 : f32
    %14 = vector.broadcast %cst_12 : f32 to vector<16x128xf32>
    %15 = arith.subf %14, %13 : vector<16x128xf32>
    %16 = math.exp %15 : vector<16x128xf32>
    %cst_13 = arith.constant 1.000000e+00 : f32
    %17 = vector.broadcast %cst_13 : f32 to vector<16x128xf32>
    %18 = arith.addf %17, %16 : vector<16x128xf32>
    %19 = tpu.reciprocal %18 {approx = true} : vector<16x128xf32> -> vector<16x128xf32>
    %c0_14 = arith.constant 0 : index
    %c0_15 = arith.constant 0 : index
    %20 = vector.load %arg7[%c0_14, %c0_15] : memref<16x128xf32, #tpu.memory_space<vmem>>, vector<16x128xf32>
    tpu.vector_store %arg7[%c0_14, %c0_15], %19 {strides = array<i32>} : memref<16x128xf32, #tpu.memory_space<vmem>>, vector<16x128xf32>,
    %c0_16 = arith.constant 0 : index
    %c0_17 = arith.constant 0 : index
    %21 = vector.load %arg7[%c0_16, %c0_17] : memref<16x128xf32, #tpu.memory_space<vmem>>, vector<16x128xf32>
    %22 = arith.truncf %21 : vector<16x128xf32> to vector<16x128xbf16>
    %c0_18 = arith.constant 0 : index
    %c0_19 = arith.constant 0 : index
    %23 = vector.load %arg4[%c0_18, %c0_19] : memref<128x128xbf16, #tpu.memory_space<vmem>>, vector<128x128xbf16>
    %cst_20 = arith.constant dense<0.000000e+00> : vector<16x128xf32>
    %24 = tpu.matmul %22, %23, %cst_20 {dimension_numbers = #tpu.dot_dimension_numbers<[1], [0], [0], [1], [0, 0, 1, 1], [], []>} : vector<16x128xbf16>, vector<128x128xbf16>, vector<16x128xf32> -> vector<16x128xf32>
    %cst_21 = arith.constant 0.000000e+00 : f32
    %25 = vector.broadcast %cst_21 : f32 to vector<16x128xf32>
    %26 = arith.subf %25, %24 : vector<16x128xf32>
    %27 = math.exp %26 : vector<16x128xf32>
    %cst_22 = arith.constant 1.000000e+00 : f32
    %28 = vector.broadcast %cst_22 : f32 to vector<16x128xf32>
    %29 = arith.addf %28, %27 : vector<16x128xf32>
    %30 = tpu.reciprocal %29 {approx = true} : vector<16x128xf32> -> vector<16x128xf32>
    %c0_23 = arith.constant 0 : index
    %c0_24 = arith.constant 0 : index
    %31 = vector.load %arg5[%c0_23, %c0_24] : memref<16x128xf32, #tpu.memory_space<vmem>>, vector<16x128xf32>
    tpu.vector_store %arg5[%c0_23, %c0_24], %30 {strides = array<i32>} : memref<16x128xf32, #tpu.memory_space<vmem>>, vector<16x128xf32>,
    return
  }
  func.func @transform_0(%arg0: i32) -> (i32, i32) {
    %c0_i32 = arith.constant 0 : i32
    %c0_i32_0 = arith.constant 0 : i32
    return %arg0, %c0_i32 : i32, i32
  }
  func.func @transform_1(%arg0: i32) -> (i32, i32) {
    %c0_i32 = arith.constant 0 : i32
    %c0_i32_0 = arith.constant 0 : i32
    %c0_i32_1 = arith.constant 0 : i32
    return %c0_i32, %c0_i32_0 : i32, i32
  }
  func.func @transform_2(%arg0: i32) -> (i32, i32) {
    %c0_i32 = arith.constant 0 : i32
    %c0_i32_0 = arith.constant 0 : i32
    %c0_i32_1 = arith.constant 0 : i32
    return %c0_i32, %c0_i32_0 : i32, i32
  }
  func.func @transform_3(%arg0: i32) -> (i32, i32) {
    %c0_i32 = arith.constant 0 : i32
    %c0_i32_0 = arith.constant 0 : i32
    %c0_i32_1 = arith.constant 0 : i32
    return %c0_i32, %c0_i32_0 : i32, i32
  }
  func.func @transform_4(%arg0: i32) -> (i32, i32) {
    %c0_i32 = arith.constant 0 : i32
    %c0_i32_0 = arith.constant 0 : i32
    return %arg0, %c0_i32 : i32, i32
  }
}

</mosaic_0001>

<llo_original>
// kernel: tpu_custom_call.1
$region0: #{tpu_custom_call.1}
  #allocation0 [shape = 'u32[]', space=smem, size = 0x4, offset = 0x4, fixed_abs, tag = 'smem constant byte address 0x4 - core index']
  #allocation1 [shape = 'u32[144,128]{1,0:T(1,128)}', space=vmem, size = 0x12000, scoped, tag = 'internal scratch']
  #allocation2 [shape = 'f32[16,128]{1,0:T(8,128)}', space=vmem, size = 0x2000, scoped, tag = 'scratch operand']
  #allocation3 [shape = 'f32[16,128]{1,0:T(8,128)}', space=vmem, size = 0x2000, scoped, tag = 'scratch operand']
  %s0 = inlined_call_operand.hbm [shape: bf16[16,128], index: 0, kind: input, shape index: {}]
  %s1 = inlined_call_operand.hbm [shape: bf16[128,128], index: 1, kind: input, shape index: {}]
  %s2 = inlined_call_operand.hbm [shape: bf16[128,128], index: 2, kind: input, shape index: {}]
  %s3 = inlined_call_operand.hbm [shape: bf16[128,128], index: 3, kind: input, shape index: {}]
  %s4 = inlined_call_operand.hbm [shape: f32[16,128], index: 4, kind: output, shape index: {}]
  %s5 = sld [smem:[#allocation0]]
  $region42: #{tpu_custom_call.1} parent=0
    _
  %s7 = ssub.s32 1, %s5
  %s8 = scalar_select 0, %s7, %s5
  $region1: #{tpu_custom_call.1} parent=0
    #allocation4 [shape = 'u8[4096]{0}', space=vmem, size = 0x1000, scoped, tag = 'input window, operand 0, single buffered']
    #allocation5 [shape = 's32[1]{0}', space=sflag, size = 0x4, scoped, tag = 'scoped memory for tpu_custom_call.1']
    #allocation6 [shape = 's32[1]{0}', space=sflag, size = 0x4, scoped, tag = 'scoped memory for tpu_custom_call.1']
    #allocation7 [shape = 'u8[32768]{0}', space=vmem, size = 0x8000, scoped, tag = 'input window, operand 1, single buffered']
    #allocation8 [shape = 's32[1]{0}', space=sflag, size = 0x4, scoped, tag = 'scoped memory for tpu_custom_call.1']
    #allocation9 [shape = 'u8[32768]{0}', space=vmem, size = 0x8000, scoped, tag = 'input window, operand 2, single buffered']
    #allocation10 [shape = 'u8[32768]{0}', space=vmem, size = 0x8000, scoped, tag = 'input window, operand 3, single buffered']
    #allocation11 [shape = 's32[1]{0}', space=sflag, size = 0x4, scoped, tag = 'scoped memory for tpu_custom_call.1']
    #allocation12 [shape = 'u8[8192]{0}', space=vmem, size = 0x2000, scoped, tag = 'output window, operand 0, single buffered']
    %9 = vsyncpa [#allocation5], 0
    %10 = vsyncpa [#allocation8], 0
    %11 = vsyncpa [#allocation11], 0
    %12 = vsyncpa [#allocation6], 0
    // Predicated region
    $region2: #{tpu_custom_call.1} parent=1 // pred_check
      _
    $region3: #{tpu_custom_call.1} parent=1 // pred_check_branch
      %14 = sbr.rel (0) target = $region5
    $region4: #{tpu_custom_call.1} parent=1 // pred_region
      %s16 = ssub.s32 128, 128
      %17 = vsyncadd [#allocation5], %s16
      %s18 = sshll.u32 [#allocation4], 4
      %s19 = int_to_ptr.vmem [resolvable:$true] %s18
      %24 = dma.hbm_to_vmem [thread:$0]  %s0, 128, %s19, [#allocation5], 64, 64, 4
    $region5: #{tpu_custom_call.1} parent=1 // pred_fallthru
      _
    // Predicated region
    $region6: #{tpu_custom_call.1} parent=1 // pred_check
      _
    $region7: #{tpu_custom_call.1} parent=1 // pred_check_branch
      %26 = sbr.rel (0) target = $region9
    $region8: #{tpu_custom_call.1} parent=1 // pred_region
      %s28 = ssub.s32 1024, 1024
      %29 = vsyncadd [#allocation8], %s28
      %s30 = sshll.u32 [#allocation7], 4
      %s31 = int_to_ptr.vmem [resolvable:$true] %s30
      %36 = dma.hbm_to_vmem [thread:$0]  %s1, 1024, %s31, [#allocation8], 64, 64, 4
    $region9: #{tpu_custom_call.1} parent=1 // pred_fallthru
      _
    // Predicated region
    $region10: #{tpu_custom_call.1} parent=1 // pred_check
      _
    $region11: #{tpu_custom_call.1} parent=1 // pred_check_branch
      %38 = sbr.rel (0) target = $region13
    $region12: #{tpu_custom_call.1} parent=1 // pred_region
      %s40 = ssub.s32 1024, 1024
      %41 = vsyncadd [#allocation8], %s40
      %s42 = sshll.u32 [#allocation9], 4
      %s43 = int_to_ptr.vmem [resolvable:$true] %s42
      %48 = dma.hbm_to_vmem [thread:$0]  %s2, 1024, %s43, [#allocation8], 64, 64, 4
    $region13: #{tpu_custom_call.1} parent=1 // pred_fallthru
      _
    // Predicated region
    $region14: #{tpu_custom_call.1} parent=1 // pred_check
      _
    $region15: #{tpu_custom_call.1} parent=1 // pred_check_branch
      %50 = sbr.rel (0) target = $region17
    $region16: #{tpu_custom_call.1} parent=1 // pred_region
      %s52 = ssub.s32 1024, 1024
      %53 = vsyncadd [#allocation11], %s52
      %s54 = sshll.u32 [#allocation10], 4
      %s55 = int_to_ptr.vmem [resolvable:$true] %s54
      %60 = dma.hbm_to_vmem [thread:$0]  %s3, 1024, %s55, [#allocation11], 64, 64, 4
    $region17: #{tpu_custom_call.1} parent=1 // pred_fallthru
      _
    // Predicated region
    $region18: #{tpu_custom_call.1} parent=1 // pred_check
      _
    $region19: #{tpu_custom_call.1} parent=1 // pred_check_branch
      %62 = sbr.rel (0) target = $region21
    $region20: #{tpu_custom_call.1} parent=1 // pred_region
      %63 = dma.done [#allocation5], 128
    $region21: #{tpu_custom_call.1} parent=1 // pred_fallthru
      _
    // Predicated region
    $region22: #{tpu_custom_call.1} parent=1 // pred_check
      _
    $region23: #{tpu_custom_call.1} parent=1 // pred_check_branch
      %65 = sbr.rel (0) target = $region25
    $region24: #{tpu_custom_call.1} parent=1 // pred_region
      %66 = dma.done [#allocation8], 1024
    $region25: #{tpu_custom_call.1} parent=1 // pred_fallthru
      _
    // Predicated region
    $region26: #{tpu_custom_call.1} parent=1 // pred_check
      _
    $region27: #{tpu_custom_call.1} parent=1 // pred_check_branch
      %68 = sbr.rel (0) target = $region29
    $region28: #{tpu_custom_call.1} parent=1 // pred_region
      %69 = dma.done [#allocation8], 1024
    $region29: #{tpu_custom_call.1} parent=1 // pred_fallthru
      _
    // Predicated region
    $region30: #{tpu_custom_call.1} parent=1 // pred_check
      _
    $region31: #{tpu_custom_call.1} parent=1 // pred_check_branch
      %71 = sbr.rel (0) target = $region33
    $region32: #{tpu_custom_call.1} parent=1 // pred_region
      %72 = dma.done [#allocation11], 1024
    $region33: #{tpu_custom_call.1} parent=1 // pred_fallthru
      _
    %v74 = vld [vmem:[#allocation4] sm:$0xf]
    %v75 = vld [vmem:[#allocation4 + $0x4] sm:$0xf]
    %v76 = vld [vmem:[#allocation7] sm:$0xf]
    %v77 = vld [vmem:[#allocation7 + $0x4] sm:$0xf]
    %v78 = vld [vmem:[#allocation7 + $0x8] sm:$0xf]
    %v79 = vld [vmem:[#allocation7 + $0xc] sm:$0xf]
    %v80 = vld [vmem:[#allocation7 + $0x10] sm:$0xf]
    %v81 = vld [vmem:[#allocation7 + $0x14] sm:$0xf]
    %v82 = vld [vmem:[#allocation7 + $0x18] sm:$0xf]
    %v83 = vld [vmem:[#allocation7 + $0x1c] sm:$0xf]
    %v84 = vld [vmem:[#allocation7 + $0x20] sm:$0xf]
    %v85 = vld [vmem:[#allocation7 + $0x24] sm:$0xf]
    %v86 = vld [vmem:[#allocation7 + $0x28] sm:$0xf]
    %v87 = vld [vmem:[#allocation7 + $0x2c] sm:$0xf]
    %v88 = vld [vmem:[#allocation7 + $0x30] sm:$0xf]
    %v89 = vld [vmem:[#allocation7 + $0x34] sm:$0xf]
    %v90 = vld [vmem:[#allocation7 + $0x38] sm:$0xf]
    %v91 = vld [vmem:[#allocation7 + $0x3c] sm:$0xf]
    %v94 = vunpack.c.l.b16 %v74
    %v95 = vunpack.c.l.b16 %v75
    %v96 = vpack.c.b16 %v95, %v94
    %v114 = vunpack.c.l.b16 %v76
    %v115 = vunpack.c.l.b16 %v77
    %v116 = vunpack.c.l.b16 %v78
    %v117 = vunpack.c.l.b16 %v79
    %v118 = vunpack.c.l.b16 %v80
    %v119 = vunpack.c.l.b16 %v81
    %v120 = vunpack.c.l.b16 %v82
    %v121 = vunpack.c.l.b16 %v83
    %v122 = vunpack.c.l.b16 %v84
    %v123 = vunpack.c.l.b16 %v85
    %v124 = vunpack.c.l.b16 %v86
    %v125 = vunpack.c.l.b16 %v87
    %v126 = vunpack.c.l.b16 %v88
    %v127 = vunpack.c.l.b16 %v89
    %v128 = vunpack.c.l.b16 %v90
    %v129 = vunpack.c.l.b16 %v91
    %v130 = vpack.c.b16 %v115, %v114
    %v131 = vpack.c.b16 %v117, %v116
    %v132 = vpack.c.b16 %v119, %v118
    %v133 = vpack.c.b16 %v121, %v120
    %v134 = vpack.c.b16 %v123, %v122
    %v135 = vpack.c.b16 %v125, %v124
    %v136 = vpack.c.b16 %v127, %v126
    %v137 = vpack.c.b16 %v129, %v128
    %146 = vmatprep.subr.bf16.mxu0 0
    %147 = vmatpush1.bf16.msra.mxu0 %v130
    %148 = vmatprep.subr.bf16.mxu0 0
    %149 = vmatpush1.bf16.msra.mxu0 %v131
    %150 = vmatprep.subr.bf16.mxu0 0
    %151 = vmatpush1.bf16.msra.mxu0 %v132
    %152 = vmatprep.subr.bf16.mxu0 0
    %153 = vmatpush1.bf16.msra.mxu0 %v133
    %154 = vmatprep.subr.bf16.mxu0 0
    %155 = vmatpush1.bf16.msra.mxu0 %v134
    %156 = vmatprep.subr.bf16.mxu0 0
    %157 = vmatpush1.bf16.msra.mxu0 %v135
    %158 = vmatprep.subr.bf16.mxu0 0
    %159 = vmatpush1.bf16.msra.mxu0 %v136
    %160 = vmatprep.subr.bf16.mxu0 0
    %161 = vmatpush1.bf16.msra.mxu0 %v137
    %162 = vmatprep.subr.bf16.mxu0 0
    %163 = vmatpush1.bf16.msra.mxu0 0
    %164 = vmatprep.subr.bf16.mxu0 0
    %165 = vmatpush1.bf16.msra.mxu0 0
    %166 = vmatprep.subr.bf16.mxu0 0
    %167 = vmatpush1.bf16.msra.mxu0 0
    %168 = vmatprep.subr.bf16.mxu0 0
    %169 = vmatpush1.bf16.msra.mxu0 0
    %170 = vmatprep.subr.bf16.mxu0 0
    %171 = vmatpush1.bf16.msra.mxu0 0
    %172 = vmatprep.subr.bf16.mxu0 0
    %173 = vmatpush1.bf16.msra.mxu0 0
    %174 = vmatprep.subr.bf16.mxu0 0
    %175 = vmatpush1.bf16.msra.mxu0 0
    %176 = vmatprep.subr.bf16.mxu0 0
    %177 = vmatpush1.bf16.msra.mxu0 0
    %178 = vmatprep.mubr.bf16.mxu0 0
    %179 = vmatmul.mubr.bf16.gmra.mrb[0].mxu0 %v96
    %v180 = vpop.f32.mrb[0].mxu0
    %v181 = vadd.f32 0.0, %v180
    %v182 = vpop.f32.mrb[0].mxu0
    %v183 = vpop.f32.mrb[0].mxu0
    %v184 = vadd.f32 0.0, %v183
    %v185 = vpop.f32.mrb[0].mxu0
    %186 = vdwg.mxu0
    %v187 = vsub.f32 0.0, %v181
    %v188 = vsub.f32 0.0, %v184
    %v189 = vmul.f32 %v187, 1.442695
    %v190 = vpow.pop %v189
    %v191 = vmul.f32 %v188, 1.442695
    %v192 = vpow.pop %v191
    %v193 = vadd.f32 %v190, 1.0
    %v194 = vadd.f32 %v192, 1.0
    %v195 = vrcp.pop %v193
    %v196 = vrcp.pop %v194
    %197 = vst [vmem:[#allocation2] sm:$0xff] %v195
    %198 = vst [vmem:[#allocation2 + $0x8] sm:$0xff] %v196
    %v199 = vld [vmem:[#allocation2] sm:$0xff]
    %v200 = vld [vmem:[#allocation2 + $0x8] sm:$0xff]
    %v201 = vpack.c.bf16 %v200, %v199
    %v202 = vld [vmem:[#allocation9] sm:$0xf]
    %v203 = vld [vmem:[#allocation9 + $0x4] sm:$0xf]
    %v204 = vld [vmem:[#allocation9 + $0x8] sm:$0xf]
    %v205 = vld [vmem:[#allocation9 + $0xc] sm:$0xf]
    %v206 = vld [vmem:[#allocation9 + $0x10] sm:$0xf]
    %v207 = vld [vmem:[#allocation9 + $0x14] sm:$0xf]
    %v208 = vld [vmem:[#allocation9 + $0x18] sm:$0xf]
    %v209 = vld [vmem:[#allocation9 + $0x1c] sm:$0xf]
    %v210 = vld [vmem:[#allocation9 + $0x20] sm:$0xf]
    %v211 = vld [vmem:[#allocation9 + $0x24] sm:$0xf]
    %v212 = vld [vmem:[#allocation9 + $0x28] sm:$0xf]
    %v213 = vld [vmem:[#allocation9 + $0x2c] sm:$0xf]
    %v214 = vld [vmem:[#allocation9 + $0x30] sm:$0xf]
    %v215 = vld [vmem:[#allocation9 + $0x34] sm:$0xf]
    %v216 = vld [vmem:[#allocation9 + $0x38] sm:$0xf]
    %v217 = vld [vmem:[#allocation9 + $0x3c] sm:$0xf]
    %v234 = vunpack.c.l.b16 %v202
    %v235 = vunpack.c.l.b16 %v203
    %v236 = vunpack.c.l.b16 %v204
    %v237 = vunpack.c.l.b16 %v205
    %v238 = vunpack.c.l.b16 %v206
    %v239 = vunpack.c.l.b16 %v207
    %v240 = vunpack.c.l.b16 %v208
    %v241 = vunpack.c.l.b16 %v209
    %v242 = vunpack.c.l.b16 %v210
    %v243 = vunpack.c.l.b16 %v211
    %v244 = vunpack.c.l.b16 %v212
    %v245 = vunpack.c.l.b16 %v213
    %v246 = vunpack.c.l.b16 %v214
    %v247 = vunpack.c.l.b16 %v215
    %v248 = vunpack.c.l.b16 %v216
    %v249 = vunpack.c.l.b16 %v217
    %v250 = vpack.c.b16 %v235, %v234
    %v251 = vpack.c.b16 %v237, %v236
    %v252 = vpack.c.b16 %v239, %v238
    %v253 = vpack.c.b16 %v241, %v240
    %v254 = vpack.c.b16 %v243, %v242
    %v255 = vpack.c.b16 %v245, %v244
    %v256 = vpack.c.b16 %v247, %v246
    %v257 = vpack.c.b16 %v249, %v248
    %266 = vmatprep.subr.bf16.mxu0 0
    %267 = vmatpush1.bf16.msra.mxu0 %v250
    %268 = vmatprep.subr.bf16.mxu0 0
    %269 = vmatpush1.bf16.msra.mxu0 %v251
    %270 = vmatprep.subr.bf16.mxu0 0
    %271 = vmatpush1.bf16.msra.mxu0 %v252
    %272 = vmatprep.subr.bf16.mxu0 0
    %273 = vmatpush1.bf16.msra.mxu0 %v253
    %274 = vmatprep.subr.bf16.mxu0 0
    %275 = vmatpush1.bf16.msra.mxu0 %v254
    %276 = vmatprep.subr.bf16.mxu0 0
    %277 = vmatpush1.bf16.msra.mxu0 %v255
    %278 = vmatprep.subr.bf16.mxu0 0
    %279 = vmatpush1.bf16.msra.mxu0 %v256
    %280 = vmatprep.subr.bf16.mxu0 0
    %281 = vmatpush1.bf16.msra.mxu0 %v257
    %282 = vmatprep.subr.bf16.mxu0 0
    %283 = vmatpush1.bf16.msra.mxu0 0
    %284 = vmatprep.subr.bf16.mxu0 0
    %285 = vmatpush1.bf16.msra.mxu0 0
    %286 = vmatprep.subr.bf16.mxu0 0
    %287 = vmatpush1.bf16.msra.mxu0 0
    %288 = vmatprep.subr.bf16.mxu0 0
    %289 = vmatpush1.bf16.msra.mxu0 0
    %290 = vmatprep.subr.bf16.mxu0 0
    %291 = vmatpush1.bf16.msra.mxu0 0
    %292 = vmatprep.subr.bf16.mxu0 0
    %293 = vmatpush1.bf16.msra.mxu0 0
    %294 = vmatprep.subr.bf16.mxu0 0
    %295 = vmatpush1.bf16.msra.mxu0 0
    %296 = vmatprep.subr.bf16.mxu0 0
    %297 = vmatpush1.bf16.msra.mxu0 0
    %298 = vmatprep.mubr.bf16.mxu0 0
    %299 = vmatmul.mubr.bf16.gmra.mrb[0].mxu0 %v201
    %v300 = vpop.f32.mrb[0].mxu0
    %v301 = vadd.f32 0.0, %v300
    %v302 = vpop.f32.mrb[0].mxu0
    %v303 = vpop.f32.mrb[0].mxu0
    %v304 = vadd.f32 0.0, %v303
    %v305 = vpop.f32.mrb[0].mxu0
    %306 = vdwg.mxu0
    %v307 = vsub.f32 0.0, %v301
    %v308 = vsub.f32 0.0, %v304
    %v309 = vmul.f32 %v307, 1.442695
    %v310 = vpow.pop %v309
    %v311 = vmul.f32 %v308, 1.442695
    %v312 = vpow.pop %v311
    %v313 = vadd.f32 %v310, 1.0
    %v314 = vadd.f32 %v312, 1.0
    %v315 = vrcp.pop %v313
    %v316 = vrcp.pop %v314
    %317 = vst [vmem:[#allocation3] sm:$0xff] %v315
    %318 = vst [vmem:[#allocation3 + $0x8] sm:$0xff] %v316
    %v319 = vld [vmem:[#allocation3] sm:$0xff]
    %v320 = vld [vmem:[#allocation3 + $0x8] sm:$0xff]
    %v321 = vpack.c.bf16 %v320, %v319
    %v322 = vld [vmem:[#allocation10] sm:$0xf]
    %v323 = vld [vmem:[#allocation10 + $0x4] sm:$0xf]
    %v324 = vld [vmem:[#allocation10 + $0x8] sm:$0xf]
    %v325 = vld [vmem:[#allocation10 + $0xc] sm:$0xf]
    %v326 = vld [vmem:[#allocation10 + $0x10] sm:$0xf]
    %v327 = vld [vmem:[#allocation10 + $0x14] sm:$0xf]
    %v328 = vld [vmem:[#allocation10 + $0x18] sm:$0xf]
    %v329 = vld [vmem:[#allocation10 + $0x1c] sm:$0xf]
    %v330 = vld [vmem:[#allocation10 + $0x20] sm:$0xf]
    %v331 = vld [vmem:[#allocation10 + $0x24] sm:$0xf]
    %v332 = vld [vmem:[#allocation10 + $0x28] sm:$0xf]
    %v333 = vld [vmem:[#allocation10 + $0x2c] sm:$0xf]
    %v334 = vld [vmem:[#allocation10 + $0x30] sm:$0xf]
    %v335 = vld [vmem:[#allocation10 + $0x34] sm:$0xf]
    %v336 = vld [vmem:[#allocation10 + $0x38] sm:$0xf]
    %v337 = vld [vmem:[#allocation10 + $0x3c] sm:$0xf]
    %v354 = vunpack.c.l.b16 %v322
    %v355 = vunpack.c.l.b16 %v323
    %v356 = vunpack.c.l.b16 %v324
    %v357 = vunpack.c.l.b16 %v325
    %v358 = vunpack.c.l.b16 %v326
    %v359 = vunpack.c.l.b16 %v327
    %v360 = vunpack.c.l.b16 %v328
    %v361 = vunpack.c.l.b16 %v329
    %v362 = vunpack.c.l.b16 %v330
    %v363 = vunpack.c.l.b16 %v331
    %v364 = vunpack.c.l.b16 %v332
    %v365 = vunpack.c.l.b16 %v333
    %v366 = vunpack.c.l.b16 %v334
    %v367 = vunpack.c.l.b16 %v335
    %v368 = vunpack.c.l.b16 %v336
    %v369 = vunpack.c.l.b16 %v337
    %v370 = vpack.c.b16 %v355, %v354
    %v371 = vpack.c.b16 %v357, %v356
    %v372 = vpack.c.b16 %v359, %v358
    %v373 = vpack.c.b16 %v361, %v360
    %v374 = vpack.c.b16 %v363, %v362
    %v375 = vpack.c.b16 %v365, %v364
    %v376 = vpack.c.b16 %v367, %v366
    %v377 = vpack.c.b16 %v369, %v368
    %386 = vmatprep.subr.bf16.mxu0 0
    %387 = vmatpush1.bf16.msra.mxu0 %v370
    %388 = vmatprep.subr.bf16.mxu0 0
    %389 = vmatpush1.bf16.msra.mxu0 %v371
    %390 = vmatprep.subr.bf16.mxu0 0
    %391 = vmatpush1.bf16.msra.mxu0 %v372
    %392 = vmatprep.subr.bf16.mxu0 0
    %393 = vmatpush1.bf16.msra.mxu0 %v373
    %394 = vmatprep.subr.bf16.mxu0 0
    %395 = vmatpush1.bf16.msra.mxu0 %v374
    %396 = vmatprep.subr.bf16.mxu0 0
    %397 = vmatpush1.bf16.msra.mxu0 %v375
    %398 = vmatprep.subr.bf16.mxu0 0
    %399 = vmatpush1.bf16.msra.mxu0 %v376
    %400 = vmatprep.subr.bf16.mxu0 0
    %401 = vmatpush1.bf16.msra.mxu0 %v377
    %402 = vmatprep.subr.bf16.mxu0 0
    %403 = vmatpush1.bf16.msra.mxu0 0
    %404 = vmatprep.subr.bf16.mxu0 0
    %405 = vmatpush1.bf16.msra.mxu0 0
    %406 = vmatprep.subr.bf16.mxu0 0
    %407 = vmatpush1.bf16.msra.mxu0 0
    %408 = vmatprep.subr.bf16.mxu0 0
    %409 = vmatpush1.bf16.msra.mxu0 0
    %410 = vmatprep.subr.bf16.mxu0 0
    %411 = vmatpush1.bf16.msra.mxu0 0
    %412 = vmatprep.subr.bf16.mxu0 0
    %413 = vmatpush1.bf16.msra.mxu0 0
    %414 = vmatprep.subr.bf16.mxu0 0
    %415 = vmatpush1.bf16.msra.mxu0 0
    %416 = vmatprep.subr.bf16.mxu0 0
    %417 = vmatpush1.bf16.msra.mxu0 0
    %418 = vmatprep.mubr.bf16.mxu0 0
    %419 = vmatmul.mubr.bf16.gmra.mrb[0].mxu0 %v321
    %v420 = vpop.f32.mrb[0].mxu0
    %v421 = vadd.f32 0.0, %v420
    %v422 = vpop.f32.mrb[0].mxu0
    %v423 = vpop.f32.mrb[0].mxu0
    %v424 = vadd.f32 0.0, %v423
    %v425 = vpop.f32.mrb[0].mxu0
    %426 = vdwg.mxu0
    %v427 = vsub.f32 0.0, %v421
    %v428 = vsub.f32 0.0, %v424
    %v429 = vmul.f32 %v427, 1.442695
    %v430 = vpow.pop %v429
    %v431 = vmul.f32 %v428, 1.442695
    %v432 = vpow.pop %v431
    %v433 = vadd.f32 %v430, 1.0
    %v434 = vadd.f32 %v432, 1.0
    %v435 = vrcp.pop %v433
    %v436 = vrcp.pop %v434
    %437 = vst [vmem:[#allocation12] sm:$0xff] %v435
    %438 = vst [vmem:[#allocation12 + $0x8] sm:$0xff] %v436
    // Predicated region
    $region34: #{tpu_custom_call.1} parent=1 // pred_check
      _
    $region35: #{tpu_custom_call.1} parent=1 // pred_check_branch
      %440 = sbr.rel (0) target = $region37
    $region36: #{tpu_custom_call.1} parent=1 // pred_region
      %s442 = ssub.s32 256, 256
      %443 = vsyncadd [#allocation6], %s442
      %s444 = sshll.u32 [#allocation12], 4
      %s445 = int_to_ptr.vmem [resolvable:$true] %s444
      %450 = dma.vmem_to_hbm [thread:$0]  %s445, 256, %s4, [#allocation6], 128, 128, 8
    $region37: #{tpu_custom_call.1} parent=1 // pred_fallthru
      _
    // Predicated region
    $region38: #{tpu_custom_call.1} parent=1 // pred_check
      _
    $region39: #{tpu_custom_call.1} parent=1 // pred_check_branch
      %452 = sbr.rel (0) target = $region41
    $region40: #{tpu_custom_call.1} parent=1 // pred_region
      %453 = dma.done [#allocation6], 256
    $region41: #{tpu_custom_call.1} parent=1 // pred_fallthru
      _
    %454 = vsyncpa [#allocation5], 1
    %455 = vsyncpa [#allocation8], 1
    %456 = vsyncpa [#allocation11], 1
    %457 = vsyncpa [#allocation6], 1

</llo_original>
